<compile_context>
chip_gen: v6e
topology: v6e:2x2x1
jax: 0.10.0
libtpu: 0.0.40
codegen_flags: <defaults>
</compile_context>

<pallas_src>
import jax
import jax.numpy as jnp
from jax.experimental import pallas as pl
from jax.experimental.pallas import tpu as pltpu


def _round_up(x, m):
    return ((x + m - 1) // m) * m


def _cdiv(a, b):
    return (a + b - 1) // b


def _vmem_ceiling_bytes():
    """Physical VMEM of this chip minus ~8 MiB headroom for compiler scratch."""
    try:
        info = pltpu.get_tpu_info()
        cap = int(getattr(info, "vmem_capacity_bytes", 0)) or (64 << 20)
    except Exception:
        cap = 64 << 20  # conservative (v7x-sized) fallback
    return max(16 << 20, cap - (8 << 20))


# ------------------------------ kernels -------------------------------------


def _ffn_kernel_resident(x_ref, w1_ref, b1_ref, w2_ref, b2_ref, o_ref):
    # x_ref : (TM, E)   w1_ref/w2_ref : (E, E)   b1_ref/b2_ref : (1, E) f32
    x = x_ref[...].astype(w1_ref.dtype)                     # VPU cast, free under MXU
    h = jnp.dot(x, w1_ref[...], preferred_element_type=jnp.float32) + b1_ref[...]
    h = jnp.maximum(h, 0.0)
    # dropout (inference mode) == identity
    y = jnp.dot(h.astype(w2_ref.dtype), w2_ref[...],
                preferred_element_type=jnp.float32) + b2_ref[...]
    o_ref[...] = y.astype(o_ref.dtype)


def _ffn_kernel_hidden_tiled(x_ref, w1_ref, b1_ref, w2_ref, b2_ref, o_ref, acc_ref):
    # Grid: (M tiles, hidden tiles).  x_ref: (TM, E); w1_ref: (E, TK);
    # b1_ref: (1, TK); w2_ref: (TK, E); b2_ref: (1, E); acc_ref: (TM, E) f32.
    j = pl.program_id(1)

    @pl.when(j == 0)
    def _():
        acc_ref[...] = jnp.zeros_like(acc_ref)

    x = x_ref[...].astype(w1_ref.dtype)
    h = jnp.dot(x, w1_ref[...], preferred_element_type=jnp.float32) + b1_ref[...]
    h = jnp.maximum(h, 0.0)                                  # ReLU per hidden column: tiling-safe
    acc_ref[...] += jnp.dot(h.astype(w2_ref.dtype), w2_ref[...],
                            preferred_element_type=jnp.float32)

    @pl.when(j == pl.num_programs(1) - 1)
    def _():
        o_ref[...] = (acc_ref[...] + b2_ref[...]).astype(o_ref.dtype)


# ------------------------------ wrappers ------------------------------------


def prepare_ffn_params(w1, b1, w2, b2, *, compute_dtype=None):
    """Pad weights to a 128-lane multiple and (optionally) cast them, ONCE.

    Reuse the returned dict across forward calls so the pad/cast HBM traffic is
    not paid per invocation.  Biases stay f32 (bias-add / ReLU stay f32).
    """
    emb = w1.shape[0]
    E = max(_round_up(emb, 128), 128)
    w_dtype = compute_dtype if compute_dtype is not None else w1.dtype
    pad2 = ((0, E - emb), (0, E - emb))
    w1_p = jnp.pad(w1, pad2).astype(w_dtype)
    w2_p = jnp.pad(w2, pad2).astype(w_dtype)
    b1_p = jnp.pad(b1, (0, E - emb)).astype(jnp.float32).reshape(1, E)
    b2_p = jnp.pad(b2, (0, E - emb)).astype(jnp.float32).reshape(1, E)
    return dict(w1=w1_p, b1=b1_p, w2=w2_p, b2=b2_p, emb=emb, E=E)


def transformer_ffn_prepared(in_fea, params, *, tile_m=None, tile_k=None,
                             force_hidden_tiling=False):
    """in_fea: (batch, seq, emb) or (M, emb). Returns same shape/dtype."""
    emb, E = params["emb"], params["E"]
    w1_p, b1_p, w2_p, b2_p = params["w1"], params["b1"], params["w2"], params["b2"]

    orig_shape = in_fea.shape
    assert orig_shape[-1] == emb, "last dim of in_fea must equal emb_size"
    x2d = in_fea.reshape(-1, emb)
    M = x2d.shape[0]
    out_dtype = in_fea.dtype

    x_size = jnp.dtype(in_fea.dtype).itemsize
    o_size = jnp.dtype(out_dtype).itemsize
    w_size = jnp.dtype(w1_p.dtype).itemsize

    # Lane-pad x columns only if emb is not already 128-aligned (no M pad:
    # the grid uses cdiv and Pallas masks the ragged last row tile).
    x_in = x2d if E == emb else jnp.pad(x2d, ((0, 0), (0, E - emb)))

    vmem_ceiling = _vmem_ceiling_bytes()
    weight_bytes = 2 * E * E * w_size + 2 * E * 4            # Buffered(1): count once

    sublane = 8 if x_size >= 4 else (16 if x_size == 2 else 32)

    # ---- row-tile selection -------------------------------------------------
    if tile_m is None:
        if M <= 512:
            tile_m = _round_up(max(M, 1), sublane)           # single ragged tile
        else:
            # Big tiles amortize ~0.35us/step overhead (256 -> ~63% of roofline,
            # 512/1024 -> ~85% on v6e); keep >= 4 steps so v7x megacore gets
            # >= 2 steps per TensorCore.
            tile_m = 1024
            while tile_m > 256 and _cdiv(M, tile_m) < 4:
                tile_m //= 2
    tile_m = max(sublane, _round_up(tile_m, sublane))

    use_hidden_tiling = force_hidden_tiling or (
        weight_bytes > min(40 << 20, int(0.55 * vmem_ceiling)))

    cost = pl.CostEstimate(
        flops=int(4 * M * E * E),                            # two (M,E)x(E,E) matmuls
        transcendentals=0,
        bytes_accessed=int(M * emb * (x_size + o_size) + weight_bytes),
    )

    if not use_hidden_tiling:
        # ------------------- resident-weight path ----------------------------
        def _resident_bytes(tm):
            io = 2 * tm * E * x_size + 2 * tm * E * o_size   # double-buffered x / out
            scratch = 2 * tm * E * 4                         # f32 h / y intermediates
            return weight_bytes + io + scratch + (4 << 20)

        while tile_m > 2 * sublane and _resident_bytes(tile_m) > vmem_ceiling:
            tile_m = max(sublane, _round_up(tile_m // 2, sublane))

        grid = (_cdiv(M, tile_m),)
        vmem_limit = int(min(vmem_ceiling, max(_resident_bytes(tile_m), 16 << 20)))

        def _const_spec(shape):
            # Grid-invariant operand: single buffer (constant index_map).
            return pl.BlockSpec(shape, lambda i: (0, 0), pipeline_mode=pl.Buffered(1))

        out = pl.pallas_call(
            _ffn_kernel_resident,
            out_shape=jax.ShapeDtypeStruct((M, E), out_dtype),
            grid_spec=pltpu.PrefetchScalarGridSpec(
                num_scalar_prefetch=0,
                grid=grid,
                in_specs=[
                    pl.BlockSpec((tile_m, E), lambda i: (i, 0)),   # x tile (pipelined)
                    _const_spec((E, E)),                           # W1 (resident)
                    _const_spec((1, E)),                           # b1
                    _const_spec((E, E)),                           # W2 (resident)
                    _const_spec((1, E)),                           # b2
                ],
                out_specs=pl.BlockSpec((tile_m, E), lambda i: (i, 0)),
            ),
            compiler_params=pltpu.CompilerParams(
                dimension_semantics=("parallel",),
                vmem_limit_bytes=vmem_limit,
            ),
            cost_estimate=cost,
        )(x_in, w1_p, b1_p, w2_p, b2_p)
    else:
        # ------------------- hidden-dim tiled fallback ------------------------
        def _ktiled_bytes(tm, tk_):
            wblk = 2 * (E * tk_ + tk_ * E) * w_size + 2 * tk_ * 4 + E * 4
            io = 2 * tm * E * x_size + 2 * tm * E * o_size
            scratch = tm * E * 4 + tm * tk_ * 4 + tm * E * 4  # acc + h + dot temp
            return wblk + io + scratch + (4 << 20)

        while tile_m > 2 * sublane and _ktiled_bytes(tile_m, 128) > vmem_ceiling:
            tile_m = max(sublane, _round_up(tile_m // 2, sublane))

        tile_k_req = max(128, tile_k) if tile_k is not None else 512
        cands = [c for c in range(E, 0, -128) if E % c == 0 and c <= tile_k_req]
        if not cands:
            cands = [128]
        tk = cands[-1]
        for c in cands:                                       # largest tk that fits
            if _ktiled_bytes(tile_m, c) <= vmem_ceiling:
                tk = c
                break

        grid = (_cdiv(M, tile_m), E // tk)
        vmem_limit = int(min(vmem_ceiling, max(_ktiled_bytes(tile_m, tk), 16 << 20)))

        out = pl.pallas_call(
            _ffn_kernel_hidden_tiled,
            out_shape=jax.ShapeDtypeStruct((M, E), out_dtype),
            grid_spec=pltpu.PrefetchScalarGridSpec(
                num_scalar_prefetch=0,
                grid=grid,
                in_specs=[
                    pl.BlockSpec((tile_m, E), lambda i, j: (i, 0)),   # x (constant over j)
                    pl.BlockSpec((E, tk), lambda i, j: (0, j)),       # W1 column block
                    pl.BlockSpec((1, tk), lambda i, j: (0, j)),       # b1 block
                    pl.BlockSpec((tk, E), lambda i, j: (j, 0)),       # W2 row block
                    pl.BlockSpec((1, E), lambda i, j: (0, 0),
                                 pipeline_mode=pl.Buffered(1)),       # b2 (resident)
                ],
                out_specs=pl.BlockSpec((tile_m, E), lambda i, j: (i, 0)),
                scratch_shapes=[pltpu.VMEM((tile_m, E), jnp.float32)],
            ),
            compiler_params=pltpu.CompilerParams(
                dimension_semantics=("parallel", "arbitrary"),
                vmem_limit_bytes=vmem_limit,
            ),
            cost_estimate=cost,
        )(x_in, w1_p, b1_p, w2_p, b2_p)

    if E != emb:
        out = out[:, :emb]
    return out.reshape(orig_shape)


def transformer_ffn(in_fea, w1, b1, w2, b2, *, compute_dtype=None, tile_m=None,
                    tile_k=None, force_hidden_tiling=False):
    """Convenience one-shot wrapper (prepares params each call; prefer caching
    prepare_ffn_params() output for repeated use)."""
    params = prepare_ffn_params(w1, b1, w2, b2, compute_dtype=compute_dtype)
    return transformer_ffn_prepared(in_fea, params, tile_m=tile_m, tile_k=tile_k,
                                    force_hidden_tiling=force_hidden_tiling)


# ------------------------------ reference / tests ----------------------------


def reference_ffn(in_fea, w1, b1, w2, b2):
    h = jnp.maximum(in_fea @ w1 + b1, 0.0)
    return h @ w2 + b2


def _make_params(key, emb, dtype=jnp.float32):
    k1, k2, k3, k4 = jax.random.split(key, 4)
    bound = 1.0 / float(emb) ** 0.5
    w1 = jax.random.uniform(k1, (emb, emb), minval=-bound, maxval=bound, dtype=dtype)
    b1 = jax.random.uniform(k2, (emb,), minval=-bound, maxval=bound, dtype=dtype)
    w2 = jax.random.uniform(k3, (emb, emb), minval=-bound, maxval=bound, dtype=dtype)
    b2 = jax.random.uniform(k4, (emb,), minval=-bound, maxval=bound, dtype=dtype)
    return w1, b1, w2, b2


if __name__ == "__main__":
    key = jax.random.PRNGKey(0)

    # --- Test 1: small shapes matching the module usage (resident path) -----
    batch, seq, emb = 2, 8, 32
    kx, kp = jax.random.split(key)
    in_fea = jax.random.normal(kx, (batch, seq, emb), dtype=jnp.float32)
    w1, b1, w2, b2 = _make_params(kp, emb)

    out = transformer_ffn(in_fea, w1, b1, w2, b2)
    jax.block_until_ready(out)
    ref = reference_ffn(in_fea, w1, b1, w2, b2)
    assert out.shape == in_fea.shape
    assert jnp.allclose(out, ref, atol=1e-5, rtol=1e-5)

    # --- Test 2: non-aligned M and emb -> column padding + ragged row tile ---
    batch2, seq2, emb2 = 3, 100, 96          # M = 300, E = 128
    kx2, kp2 = jax.random.split(kp)
    in_fea2 = jax.random.normal(kx2, (batch2, seq2, emb2), dtype=jnp.float32)
    w1b, b1b, w2b, b2b = _make_params(kp2, emb2)

    out2 = transformer_ffn(in_fea2, w1b, b1b, w2b, b2b)
    jax.block_until_ready(out2)
    ref2 = reference_ffn(in_fea2, w1b, b1b, w2b, b2b)
    assert out2.shape == in_fea2.shape
    assert jnp.allclose(out2, ref2, atol=1e-4, rtol=1e-4)

    # --- Test 3: hidden-dim tiled fallback path (forced, small shapes) ------
    batch3, seq3, emb3 = 2, 64, 256          # M = 128, E = 256, grid (1, 2)
    kx3, kp3 = jax.random.split(kp2)
    in_fea3 = jax.random.normal(kx3, (batch3, seq3, emb3), dtype=jnp.float32)
    w1c, b1c, w2c, b2c = _make_params(kp3, emb3)

    out3 = transformer_ffn(in_fea3, w1c, b1c, w2c, b2c,
                           force_hidden_tiling=True, tile_k=128)
    jax.block_until_ready(out3)
    ref3 = reference_ffn(in_fea3, w1c, b1c, w2c, b2c)
    assert out3.shape == in_fea3.shape
    assert jnp.allclose(out3, ref3, atol=1e-4, rtol=1e-4)

    # --- Test 4: bf16 compute path (f32 accumulation), looser tolerance -----
    batch4, seq4, emb4 = 2, 64, 128
    kx4, kp4 = jax.random.split(kp3)
    in_fea4 = jax.random.normal(kx4, (batch4, seq4, emb4), dtype=jnp.float32)
    w1d, b1d, w2d, b2d = _make_params(kp4, emb4)

    params_bf16 = prepare_ffn_params(w1d, b1d, w2d, b2d, compute_dtype=jnp.bfloat16)
    out4 = transformer_ffn_prepared(in_fea4, params_bf16)
    jax.block_until_ready(out4)
    ref4 = reference_ffn(in_fea4, w1d, b1d, w2d, b2d)
    assert out4.shape == in_fea4.shape
    assert jnp.allclose(out4, ref4, atol=5e-2, rtol=5e-2)

    print("KERNEL_OK")
</pallas_src>

<mosaic_0001>
module attributes {stable_mosaic.version = 11 : i64} {
  func.func @_ffn_kernel_resident(%arg0: i32, %arg1: memref<16x128xf32, #tpu.memory_space<vmem>>, %arg2: memref<128x128xf32, #tpu.memory_space<vmem>>, %arg3: memref<1x128xf32, #tpu.memory_space<vmem>>, %arg4: memref<128x128xf32, #tpu.memory_space<vmem>>, %arg5: memref<1x128xf32, #tpu.memory_space<vmem>>, %arg6: memref<16x128xf32, #tpu.memory_space<vmem>>) attributes {dimension_semantics = [#tpu.dimension_semantics<parallel>], iteration_bounds = array<i64: 1>, scalar_prefetch = 0 : i64, scratch_operands = 0 : i64, tpu.core_type = #tpu.core_type<tc>, window_params = [{transform_indices = @transform_0, window_bounds = array<i64: 16, 128>}, {pipeline_mode = #tpu.pipeline_mode<synchronous>, transform_indices = @transform_1, window_bounds = array<i64: 128, 128>}, {pipeline_mode = #tpu.pipeline_mode<synchronous>, transform_indices = @transform_2, window_bounds = array<i64: 1, 128>}, {pipeline_mode = #tpu.pipeline_mode<synchronous>, transform_indices = @transform_3, window_bounds = array<i64: 128, 128>}, {pipeline_mode = #tpu.pipeline_mode<synchronous>, transform_indices = @transform_4, window_bounds = array<i64: 1, 128>}, {transform_indices = @transform_5, window_bounds = array<i64: 16, 128>}]} {
    %c0 = arith.constant 0 : index
    %c0_0 = arith.constant 0 : index
    %0 = vector.load %arg1[%c0, %c0_0] : memref<16x128xf32, #tpu.memory_space<vmem>>, vector<16x128xf32>
    %c0_1 = arith.constant 0 : index
    %c0_2 = arith.constant 0 : index
    %1 = vector.load %arg2[%c0_1, %c0_2] : memref<128x128xf32, #tpu.memory_space<vmem>>, vector<128x128xf32>
    %cst = arith.constant dense<0.000000e+00> : vector<16x128xf32>
    %2 = tpu.matmul %0, %1, %cst {dimension_numbers = #tpu.dot_dimension_numbers<[1], [0], [0], [1], [0, 0, 1, 1], [], []>} : vector<16x128xf32>, vector<128x128xf32>, vector<16x128xf32> -> vector<16x128xf32>
    %c0_3 = arith.constant 0 : index
    %c0_4 = arith.constant 0 : index
    %3 = vector.load %arg3[%c0_3, %c0_4] : memref<1x128xf32, #tpu.memory_space<vmem>>, vector<1x128xf32>
    %4 = vector.broadcast %3 : vector<1x128xf32> to vector<16x128xf32>
    %5 = arith.addf %2, %4 : vector<16x128xf32>
    %cst_5 = arith.constant 0.000000e+00 : f32
    %6 = vector.broadcast %cst_5 : f32 to vector<16x128xf32>
    %7 = arith.maximumf %5, %6 : vector<16x128xf32>
    %c0_6 = arith.constant 0 : index
    %c0_7 = arith.constant 0 : index
    %8 = vector.load %arg4[%c0_6, %c0_7] : memref<128x128xf32, #tpu.memory_space<vmem>>, vector<128x128xf32>
    %cst_8 = arith.constant dense<0.000000e+00> : vector<16x128xf32>
    %9 = tpu.matmul %7, %8, %cst_8 {dimension_numbers = #tpu.dot_dimension_numbers<[1], [0], [0], [1], [0, 0, 1, 1], [], []>} : vector<16x128xf32>, vector<128x128xf32>, vector<16x128xf32> -> vector<16x128xf32>
    %c0_9 = arith.constant 0 : index
    %c0_10 = arith.constant 0 : index
    %10 = vector.load %arg5[%c0_9, %c0_10] : memref<1x128xf32, #tpu.memory_space<vmem>>, vector<1x128xf32>
    %11 = vector.broadcast %10 : vector<1x128xf32> to vector<16x128xf32>
    %12 = arith.addf %9, %11 : vector<16x128xf32>
    %c0_11 = arith.constant 0 : index
    %c0_12 = arith.constant 0 : index
    %13 = vector.load %arg6[%c0_11, %c0_12] : memref<16x128xf32, #tpu.memory_space<vmem>>, vector<16x128xf32>
    tpu.vector_store %arg6[%c0_11, %c0_12], %12 {strides = array<i32>} : memref<16x128xf32, #tpu.memory_space<vmem>>, vector<16x128xf32>,
    return
  }
  func.func @transform_0(%arg0: i32) -> (i32, i32) {
    %c0_i32 = arith.constant 0 : i32
    %c0_i32_0 = arith.constant 0 : i32
    return %arg0, %c0_i32 : i32, i32
  }
  func.func @transform_1(%arg0: i32) -> (i32, i32) {
    %c0_i32 = arith.constant 0 : i32
    %c0_i32_0 = arith.constant 0 : i32
    %c0_i32_1 = arith.constant 0 : i32
    return %c0_i32, %c0_i32_0 : i32, i32
  }
  func.func @transform_2(%arg0: i32) -> (i32, i32) {
    %c0_i32 = arith.constant 0 : i32
    %c0_i32_0 = arith.constant 0 : i32
    %c0_i32_1 = arith.constant 0 : i32
    return %c0_i32, %c0_i32_0 : i32, i32
  }
  func.func @transform_3(%arg0: i32) -> (i32, i32) {
    %c0_i32 = arith.constant 0 : i32
    %c0_i32_0 = arith.constant 0 : i32
    %c0_i32_1 = arith.constant 0 : i32
    return %c0_i32, %c0_i32_0 : i32, i32
  }
  func.func @transform_4(%arg0: i32) -> (i32, i32) {
    %c0_i32 = arith.constant 0 : i32
    %c0_i32_0 = arith.constant 0 : i32
    %c0_i32_1 = arith.constant 0 : i32
    return %c0_i32, %c0_i32_0 : i32, i32
  }
  func.func @transform_5(%arg0: i32) -> (i32, i32) {
    %c0_i32 = arith.constant 0 : i32
    %c0_i32_0 = arith.constant 0 : i32
    return %arg0, %c0_i32 : i32, i32
  }
}

</mosaic_0001>

<llo_original>
// kernel: tpu_custom_call.1
$region0: #{tpu_custom_call.1}
  #allocation0 [shape = 'u32[]', space=smem, size = 0x4, offset = 0x4, fixed_abs, tag = 'smem constant byte address 0x4 - core index']
  #allocation1 [shape = 'u32[144,128]{1,0:T(1,128)}', space=vmem, size = 0x12000, scoped, tag = 'internal scratch']
  %s0 = inlined_call_operand.hbm [shape: f32[16,128], index: 0, kind: input, shape index: {}]
  %s1 = inlined_call_operand.hbm [shape: f32[128,128], index: 1, kind: input, shape index: {}]
  %s2 = inlined_call_operand.vmem [shape: f32[1,128], index: 2, kind: input, shape index: {}]
  %s3 = inlined_call_operand.hbm [shape: f32[128,128], index: 3, kind: input, shape index: {}]
  %s4 = inlined_call_operand.vmem [shape: f32[1,128], index: 4, kind: input, shape index: {}]
  %s5 = inlined_call_operand.hbm [shape: f32[16,128], index: 5, kind: output, shape index: {}]
  %s6 = sld [smem:[#allocation0]]
  $region42: #{tpu_custom_call.1} parent=0
    _
  %s8 = ssub.s32 1, %s6
  %s9 = scalar_select 0, %s8, %s6
  $region1: #{tpu_custom_call.1} parent=0
    #allocation2 [shape = 'u8[8192]{0}', space=vmem, size = 0x2000, scoped, tag = 'input window, operand 0, single buffered']
    #allocation3 [shape = 's32[1]{0}', space=sflag, size = 0x4, scoped, tag = 'scoped memory for tpu_custom_call.1']
    #allocation4 [shape = 's32[1]{0}', space=sflag, size = 0x4, scoped, tag = 'scoped memory for tpu_custom_call.1']
    #allocation5 [shape = 'u8[65536]{0}', space=vmem, size = 0x10000, scoped, tag = 'input window, operand 1, single buffered']
    #allocation6 [shape = 's32[1]{0}', space=sflag, size = 0x4, scoped, tag = 'scoped memory for tpu_custom_call.1']
    #allocation7 [shape = 'u8[65536]{0}', space=vmem, size = 0x10000, scoped, tag = 'input window, operand 3, single buffered']
    #allocation8 [shape = 'u8[8192]{0}', space=vmem, size = 0x2000, scoped, tag = 'output window, operand 0, single buffered']
    %10 = vsyncpa [#allocation3], 0
    %11 = vsyncpa [#allocation6], 0
    %12 = vsyncpa [#allocation4], 0
    // Predicated region
    $region2: #{tpu_custom_call.1} parent=1 // pred_check
      _
    $region3: #{tpu_custom_call.1} parent=1 // pred_check_branch
      %14 = sbr.rel (0) target = $region5
    $region4: #{tpu_custom_call.1} parent=1 // pred_region
      %s16 = ssub.s32 256, 256
      %17 = vsyncadd [#allocation3], %s16
      %s18 = sshll.u32 [#allocation2], 4
      %s19 = int_to_ptr.vmem [resolvable:$true] %s18
      %24 = dma.hbm_to_vmem [thread:$0]  %s0, 256, %s19, [#allocation3], 128, 128, 8
    $region5: #{tpu_custom_call.1} parent=1 // pred_fallthru
      _
    // Predicated region
    $region6: #{tpu_custom_call.1} parent=1 // pred_check
      _
    $region7: #{tpu_custom_call.1} parent=1 // pred_check_branch
      %26 = sbr.rel (0) target = $region9
    $region8: #{tpu_custom_call.1} parent=1 // pred_region
      %s28 = ssub.s32 2048, 2048
      %29 = vsyncadd [#allocation6], %s28
      %s30 = sshll.u32 [#allocation5], 4
      %s31 = int_to_ptr.vmem [resolvable:$true] %s30
      %36 = dma.hbm_to_vmem [thread:$0]  %s1, 2048, %s31, [#allocation6], 128, 128, 8
    $region9: #{tpu_custom_call.1} parent=1 // pred_fallthru
      _
    // Predicated region
    $region10: #{tpu_custom_call.1} parent=1 // pred_check
      _
    $region11: #{tpu_custom_call.1} parent=1 // pred_check_branch
      %38 = sbr.rel (0) target = $region13
    $region12: #{tpu_custom_call.1} parent=1 // pred_region
      _
    $region13: #{tpu_custom_call.1} parent=1 // pred_fallthru
      _
    // Predicated region
    $region14: #{tpu_custom_call.1} parent=1 // pred_check
      _
    $region15: #{tpu_custom_call.1} parent=1 // pred_check_branch
      %40 = sbr.rel (0) target = $region17
    $region16: #{tpu_custom_call.1} parent=1 // pred_region
      %s42 = ssub.s32 2048, 2048
      %43 = vsyncadd [#allocation6], %s42
      %s44 = sshll.u32 [#allocation7], 4
      %s45 = int_to_ptr.vmem [resolvable:$true] %s44
      %50 = dma.hbm_to_vmem [thread:$0]  %s3, 2048, %s45, [#allocation6], 128, 128, 8
    $region17: #{tpu_custom_call.1} parent=1 // pred_fallthru
      _
    // Predicated region
    $region18: #{tpu_custom_call.1} parent=1 // pred_check
      _
    $region19: #{tpu_custom_call.1} parent=1 // pred_check_branch
      %52 = sbr.rel (0) target = $region21
    $region20: #{tpu_custom_call.1} parent=1 // pred_region
      _
    $region21: #{tpu_custom_call.1} parent=1 // pred_fallthru
      _
    // Predicated region
    $region22: #{tpu_custom_call.1} parent=1 // pred_check
      _
    $region23: #{tpu_custom_call.1} parent=1 // pred_check_branch
      %54 = sbr.rel (0) target = $region25
    $region24: #{tpu_custom_call.1} parent=1 // pred_region
      %55 = dma.done [#allocation3], 256
    $region25: #{tpu_custom_call.1} parent=1 // pred_fallthru
      _
    // Predicated region
    $region26: #{tpu_custom_call.1} parent=1 // pred_check
      _
    $region27: #{tpu_custom_call.1} parent=1 // pred_check_branch
      %57 = sbr.rel (0) target = $region29
    $region28: #{tpu_custom_call.1} parent=1 // pred_region
      %58 = dma.done [#allocation6], 2048
    $region29: #{tpu_custom_call.1} parent=1 // pred_fallthru
      _
    // Predicated region
    $region30: #{tpu_custom_call.1} parent=1 // pred_check
      _
    $region31: #{tpu_custom_call.1} parent=1 // pred_check_branch
      %60 = sbr.rel (0) target = $region33
    $region32: #{tpu_custom_call.1} parent=1 // pred_region
      %61 = dma.done [#allocation6], 2048
    $region33: #{tpu_custom_call.1} parent=1 // pred_fallthru
      _
    %v62 = vld [vmem:[#allocation2] sm:$0xff]
    %v63 = vld [vmem:[#allocation2 + $0x8] sm:$0xff]
    %v64 = vld [vmem:[#allocation5] sm:$0xff]
    %v65 = vld [vmem:[#allocation5 + $0x8] sm:$0xff]
    %v66 = vld [vmem:[#allocation5 + $0x10] sm:$0xff]
    %v67 = vld [vmem:[#allocation5 + $0x18] sm:$0xff]
    %v68 = vld [vmem:[#allocation5 + $0x20] sm:$0xff]
    %v69 = vld [vmem:[#allocation5 + $0x28] sm:$0xff]
    %v70 = vld [vmem:[#allocation5 + $0x30] sm:$0xff]
    %v71 = vld [vmem:[#allocation5 + $0x38] sm:$0xff]
    %v72 = vld [vmem:[#allocation5 + $0x40] sm:$0xff]
    %v73 = vld [vmem:[#allocation5 + $0x48] sm:$0xff]
    %v74 = vld [vmem:[#allocation5 + $0x50] sm:$0xff]
    %v75 = vld [vmem:[#allocation5 + $0x58] sm:$0xff]
    %v76 = vld [vmem:[#allocation5 + $0x60] sm:$0xff]
    %v77 = vld [vmem:[#allocation5 + $0x68] sm:$0xff]
    %v78 = vld [vmem:[#allocation5 + $0x70] sm:$0xff]
    %v79 = vld [vmem:[#allocation5 + $0x78] sm:$0xff]
    %v80 = vld [vmem:[%s2] sm:$0x1]
    %v82 = vlaneseq
    %v83 = vshrl.u32 %v82, 7
    %v84 = vsub.s32 0, %v83
    %v85 = vrot.slane %v80, %v84
    %87 = vmatprep.subr.mxu0 0.0
    %88 = vmatpush1.msra.mxu0 %v79
    %89 = vmatprep.subr.mxu0 0.0
    %90 = vmatpush1.msra.mxu0 %v78
    %91 = vmatprep.subr.mxu0 0.0
    %92 = vmatpush1.msra.mxu0 %v77
    %93 = vmatprep.subr.mxu0 0.0
    %94 = vmatpush1.msra.mxu0 %v76
    %95 = vmatprep.subr.mxu0 0.0
    %96 = vmatpush1.msra.mxu0 %v75
    %97 = vmatprep.subr.mxu0 0.0
    %98 = vmatpush1.msra.mxu0 %v74
    %99 = vmatprep.subr.mxu0 0.0
    %100 = vmatpush1.msra.mxu0 %v73
    %101 = vmatprep.subr.mxu0 0.0
    %102 = vmatpush1.msra.mxu0 %v72
    %103 = vmatprep.subr.mxu0 0.0
    %104 = vmatpush1.msra.mxu0 %v71
    %105 = vmatprep.subr.mxu0 0.0
    %106 = vmatpush1.msra.mxu0 %v70
    %107 = vmatprep.subr.mxu0 0.0
    %108 = vmatpush1.msra.mxu0 %v69
    %109 = vmatprep.subr.mxu0 0.0
    %110 = vmatpush1.msra.mxu0 %v68
    %111 = vmatprep.subr.mxu0 0.0
    %112 = vmatpush1.msra.mxu0 %v67
    %113 = vmatprep.subr.mxu0 0.0
    %114 = vmatpush1.msra.mxu0 %v66
    %115 = vmatprep.subr.mxu0 0.0
    %116 = vmatpush1.msra.mxu0 %v65
    %117 = vmatprep.subr.mxu0 0.0
    %118 = vmatpush1.msra.mxu0 %v64
    %119 = vmatprep.subr.mxu0 0.0
    %120 = vmatpush2.msra.mxu0 0.0
    %121 = vmatprep.subr.mxu0 0.0
    %122 = vmatpush2.msra.mxu0 0.0
    %123 = vmatprep.subr.mxu0 0.0
    %124 = vmatpush2.msra.mxu0 0.0
    %125 = vmatprep.subr.mxu0 0.0
    %126 = vmatpush2.msra.mxu0 0.0
    %127 = vmatprep.subr.mxu0 0.0
    %128 = vmatpush2.msra.mxu0 0.0
    %129 = vmatprep.subr.mxu0 0.0
    %130 = vmatpush2.msra.mxu0 0.0
    %131 = vmatprep.subr.mxu0 0.0
    %132 = vmatpush2.msra.mxu0 0.0
    %133 = vmatprep.subr.mxu0 0.0
    %134 = vmatpush2.msra.mxu0 0.0
    %135 = vmatprep.subr.mxu0 0.0
    %136 = vmatpush2.msra.mxu0 0.0
    %137 = vmatprep.subr.mxu0 0.0
    %138 = vmatpush2.msra.mxu0 0.0
    %139 = vmatprep.subr.mxu0 0.0
    %140 = vmatpush2.msra.mxu0 0.0
    %141 = vmatprep.subr.mxu0 0.0
    %142 = vmatpush2.msra.mxu0 0.0
    %143 = vmatprep.subr.mxu0 0.0
    %144 = vmatpush2.msra.mxu0 0.0
    %145 = vmatprep.subr.mxu0 0.0
    %146 = vmatpush2.msra.mxu0 0.0
    %147 = vmatprep.subr.mxu0 0.0
    %148 = vmatpush2.msra.mxu0 0.0
    %149 = vmatprep.subr.mxu0 0.0
    %150 = vmatpush2.msra.mxu0 0.0
    %151 = vmatprep.mubr.f32.mxu0 0.0
    %152 = vmatmul.mubr.f32.gmra.mxu0 %v62
    %v153 = vpop.f32.mrf.mxu0
    %v154 = vadd.f32 %v85, %v153
    %v155 = vpop.f32.mrf.mxu0
    %156 = vmatprep.mubr.f32.mxu0 0.0
    %157 = vmatmul.mubr.f32.gmra.mxu0 %v63
    %v158 = vpop.f32.mrf.mxu0
    %v159 = vadd.f32 %v85, %v158
    %v160 = vpop.f32.mrf.mxu0
    %161 = vdwg.mxu0
    %v162 = vmax.f32 %v154, 0.0
    %v163 = vmax.f32 %v159, 0.0
    %v164 = vld [vmem:[#allocation7] sm:$0xff]
    %v165 = vld [vmem:[#allocation7 + $0x8] sm:$0xff]
    %v166 = vld [vmem:[#allocation7 + $0x10] sm:$0xff]
    %v167 = vld [vmem:[#allocation7 + $0x18] sm:$0xff]
    %v168 = vld [vmem:[#allocation7 + $0x20] sm:$0xff]
    %v169 = vld [vmem:[#allocation7 + $0x28] sm:$0xff]
    %v170 = vld [vmem:[#allocation7 + $0x30] sm:$0xff]
    %v171 = vld [vmem:[#allocation7 + $0x38] sm:$0xff]
    %v172 = vld [vmem:[#allocation7 + $0x40] sm:$0xff]
    %v173 = vld [vmem:[#allocation7 + $0x48] sm:$0xff]
    %v174 = vld [vmem:[#allocation7 + $0x50] sm:$0xff]
    %v175 = vld [vmem:[#allocation7 + $0x58] sm:$0xff]
    %v176 = vld [vmem:[#allocation7 + $0x60] sm:$0xff]
    %v177 = vld [vmem:[#allocation7 + $0x68] sm:$0xff]
    %v178 = vld [vmem:[#allocation7 + $0x70] sm:$0xff]
    %v179 = vld [vmem:[#allocation7 + $0x78] sm:$0xff]
    %v180 = vld [vmem:[%s4] sm:$0x1]
    %v182 = vlaneseq
    %v183 = vshrl.u32 %v182, 7
    %v184 = vsub.s32 0, %v183
    %v185 = vrot.slane %v180, %v184
    %187 = vmatprep.subr.mxu0 0.0
    %188 = vmatpush1.msra.mxu0 %v179
    %189 = vmatprep.subr.mxu0 0.0
    %190 = vmatpush1.msra.mxu0 %v178
    %191 = vmatprep.subr.mxu0 0.0
    %192 = vmatpush1.msra.mxu0 %v177
    %193 = vmatprep.subr.mxu0 0.0
    %194 = vmatpush1.msra.mxu0 %v176
    %195 = vmatprep.subr.mxu0 0.0
    %196 = vmatpush1.msra.mxu0 %v175
    %197 = vmatprep.subr.mxu0 0.0
    %198 = vmatpush1.msra.mxu0 %v174
    %199 = vmatprep.subr.mxu0 0.0
    %200 = vmatpush1.msra.mxu0 %v173
    %201 = vmatprep.subr.mxu0 0.0
    %202 = vmatpush1.msra.mxu0 %v172
    %203 = vmatprep.subr.mxu0 0.0
    %204 = vmatpush1.msra.mxu0 %v171
    %205 = vmatprep.subr.mxu0 0.0
    %206 = vmatpush1.msra.mxu0 %v170
    %207 = vmatprep.subr.mxu0 0.0
    %208 = vmatpush1.msra.mxu0 %v169
    %209 = vmatprep.subr.mxu0 0.0
    %210 = vmatpush1.msra.mxu0 %v168
    %211 = vmatprep.subr.mxu0 0.0
    %212 = vmatpush1.msra.mxu0 %v167
    %213 = vmatprep.subr.mxu0 0.0
    %214 = vmatpush1.msra.mxu0 %v166
    %215 = vmatprep.subr.mxu0 0.0
    %216 = vmatpush1.msra.mxu0 %v165
    %217 = vmatprep.subr.mxu0 0.0
    %218 = vmatpush1.msra.mxu0 %v164
    %219 = vmatprep.subr.mxu0 0.0
    %220 = vmatpush2.msra.mxu0 0.0
    %221 = vmatprep.subr.mxu0 0.0
    %222 = vmatpush2.msra.mxu0 0.0
    %223 = vmatprep.subr.mxu0 0.0
    %224 = vmatpush2.msra.mxu0 0.0
    %225 = vmatprep.subr.mxu0 0.0
    %226 = vmatpush2.msra.mxu0 0.0
    %227 = vmatprep.subr.mxu0 0.0
    %228 = vmatpush2.msra.mxu0 0.0
    %229 = vmatprep.subr.mxu0 0.0
    %230 = vmatpush2.msra.mxu0 0.0
    %231 = vmatprep.subr.mxu0 0.0
    %232 = vmatpush2.msra.mxu0 0.0
    %233 = vmatprep.subr.mxu0 0.0
    %234 = vmatpush2.msra.mxu0 0.0
    %235 = vmatprep.subr.mxu0 0.0
    %236 = vmatpush2.msra.mxu0 0.0
    %237 = vmatprep.subr.mxu0 0.0
    %238 = vmatpush2.msra.mxu0 0.0
    %239 = vmatprep.subr.mxu0 0.0
    %240 = vmatpush2.msra.mxu0 0.0
    %241 = vmatprep.subr.mxu0 0.0
    %242 = vmatpush2.msra.mxu0 0.0
    %243 = vmatprep.subr.mxu0 0.0
    %244 = vmatpush2.msra.mxu0 0.0
    %245 = vmatprep.subr.mxu0 0.0
    %246 = vmatpush2.msra.mxu0 0.0
    %247 = vmatprep.subr.mxu0 0.0
    %248 = vmatpush2.msra.mxu0 0.0
    %249 = vmatprep.subr.mxu0 0.0
    %250 = vmatpush2.msra.mxu0 0.0
    %251 = vmatprep.mubr.f32.mxu0 0.0
    %252 = vmatmul.mubr.f32.gmra.mxu0 %v162
    %v253 = vpop.f32.mrf.mxu0
    %v254 = vadd.f32 %v185, %v253
    %v255 = vpop.f32.mrf.mxu0
    %256 = vmatprep.mubr.f32.mxu0 0.0
    %257 = vmatmul.mubr.f32.gmra.mxu0 %v163
    %v258 = vpop.f32.mrf.mxu0
    %v259 = vadd.f32 %v185, %v258
    %v260 = vpop.f32.mrf.mxu0
    %261 = vdwg.mxu0
    %262 = vst [vmem:[#allocation8] sm:$0xff] %v254
    %263 = vst [vmem:[#allocation8 + $0x8] sm:$0xff] %v259
    // Predicated region
    $region34: #{tpu_custom_call.1} parent=1 // pred_check
      _
    $region35: #{tpu_custom_call.1} parent=1 // pred_check_branch
      %265 = sbr.rel (0) target = $region37
    $region36: #{tpu_custom_call.1} parent=1 // pred_region
      %s267 = ssub.s32 256, 256
      %268 = vsyncadd [#allocation4], %s267
      %s269 = sshll.u32 [#allocation8], 4
      %s270 = int_to_ptr.vmem [resolvable:$true] %s269
      %275 = dma.vmem_to_hbm [thread:$0]  %s270, 256, %s5, [#allocation4], 128, 128, 8
    $region37: #{tpu_custom_call.1} parent=1 // pred_fallthru
      _
    // Predicated region
    $region38: #{tpu_custom_call.1} parent=1 // pred_check
      _
    $region39: #{tpu_custom_call.1} parent=1 // pred_check_branch
      %277 = sbr.rel (0) target = $region41
    $region40: #{tpu_custom_call.1} parent=1 // pred_region
      %278 = dma.done [#allocation4], 256
    $region41: #{tpu_custom_call.1} parent=1 // pred_fallthru
      _
    %279 = vsyncpa [#allocation3], 1
    %280 = vsyncpa [#allocation6], 1
    %281 = vsyncpa [#allocation4], 1

</llo_original>
